<compile_context>
chip_gen: v6e
topology: v6e:2x2x1
jax: 0.10.0
libtpu: 0.0.40
codegen_flags: <defaults>
</compile_context>

<pallas_src>
import math

import jax
import jax.numpy as jnp
import numpy as np
from jax.experimental import pallas as pl
from jax.experimental.pallas import tpu as pltpu


def _round_up(x, m):
    return (x + m - 1) // m * m


def _pair(v):
    return (v, v) if isinstance(v, int) else tuple(v)


# ------------------------------ Pallas kernel ------------------------------ #
def _conv_gemm_kernel(p_ref, w_ref, b_ref, o_ref):
    # p_ref: (tm, tk) bf16 im2col tile      w_ref: (tk, tn) bf16 weight tile
    # b_ref: (1, tn)  f32 effective bias    o_ref: (tm, tn) f32 output tile
    # The output block is resident across the k (reduction) axis and is used
    # directly as the f32 accumulator (initialized with the bias at k == 0).
    k = pl.program_id(2)

    @pl.when(k == 0)
    def _init():
        o_ref[...] = jnp.broadcast_to(b_ref[...], o_ref.shape)

    o_ref[...] += jnp.dot(p_ref[...], w_ref[...],
                          preferred_element_type=jnp.float32)


def _pallas_conv_gemm(patches, w_mat, bias_row, *, tm, tn, tk):
    # patches: (M, Kpad) bf16 ; w_mat: (Kpad, Coutp) bf16 ; bias_row: (1, Coutp) f32
    m, k_pad = patches.shape
    _, coutp = w_mat.shape
    assert k_pad % tk == 0 and coutp % tn == 0
    grid = (pl.cdiv(m, tm), coutp // tn, k_pad // tk)      # reduction axis last
    return pl.pallas_call(
        _conv_gemm_kernel,
        out_shape=jax.ShapeDtypeStruct((m, coutp), jnp.float32),
        grid_spec=pltpu.PrefetchScalarGridSpec(
            num_scalar_prefetch=0,
            grid=grid,
            in_specs=[
                pl.BlockSpec((tm, tk), lambda i, j, k: (i, k)),
                pl.BlockSpec((tk, tn), lambda i, j, k: (k, j)),
                pl.BlockSpec((1, tn), lambda i, j, k: (0, j)),
            ],
            out_specs=pl.BlockSpec((tm, tn), lambda i, j, k: (i, j)),
        ),
        compiler_params=pltpu.CompilerParams(
            # M and Cout tiles are independent (megacore / 2 TCs on v7x);
            # K is a reduction.
            dimension_semantics=("parallel", "parallel", "arbitrary"),
        ),
    )(patches, w_mat, bias_row)


# ------------------------------ im2col glue -------------------------------- #
def _im2col_padded(xp_bf16, kh, kw, stride, dilation, oh, ow, k_pad):
    # xp_bf16: (N, Hp, Wp, C) bf16 -> (N*OH*OW, Kpad) bf16, K order (tap, cin).
    # The K zero-padding is appended inside the same concatenate, so the im2col
    # matrix is materialized exactly once (no second full-matrix pad pass).
    n, _, _, c = xp_bf16.shape
    sh, sw = stride
    dh, dw = dilation
    taps = []
    for i in range(kh):
        for j in range(kw):
            taps.append(
                xp_bf16[:, i * dh: i * dh + (oh - 1) * sh + 1: sh,
                           j * dw: j * dw + (ow - 1) * sw + 1: sw, :])
    k = kh * kw * c
    if k_pad > k:
        taps.append(jnp.zeros((n, oh, ow, k_pad - k), jnp.bfloat16))
    patches = jnp.concatenate(taps, axis=-1)            # (N, OH, OW, Kpad)
    return patches.reshape(n * oh * ow, k_pad)


# ----------------------------- ShiftedConv2d -------------------------------- #
class ShiftedConv2dPallas:
    """JAX/Pallas port of deepcompressor ShiftedConv2d (forward pass)."""

    def __init__(self, in_channels, out_channels, kernel_size, shift,
                 stride=1, padding=0, dilation=1, groups=1, bias=True,
                 padding_mode="zeros", *, key):
        assert groups == 1              # TODO(synk): grouped conv not implemented.
        assert not isinstance(padding, str)  # TODO(synk): 'same'/'valid' strings not implemented.
        self.in_channels = in_channels
        self.out_channels = out_channels
        self.kernel_size = _pair(kernel_size)
        self.stride = _pair(stride)
        self.padding = _pair(padding)
        self.dilation = _pair(dilation)

        kh, kw = self.kernel_size
        fan_in = (in_channels // groups) * kh * kw
        bound = 1.0 / math.sqrt(fan_in)
        k_w, k_b = jax.random.split(key)
        self.weight = jax.random.uniform(
            k_w, (out_channels, in_channels // groups, kh, kw),
            jnp.float32, -bound, bound)
        if bias:
            self.bias = jax.random.uniform(k_b, (out_channels,),
                                           jnp.float32, -bound, bound)
        else:
            self.bias = jnp.zeros((out_channels,), jnp.float32)

        # ---- shift buffer (mirrors the PyTorch module's channel expansion) ----
        shift_arr = jnp.asarray(shift, jnp.float32).reshape(-1)
        nshift = int(shift_arr.shape[0])
        if nshift > 1:
            assert self.padding == (0, 0), \
                "Padding is not supported for multi-channel shift"
            assert in_channels >= nshift and in_channels % nshift == 0
            # expand(S, C//S).reshape(C): consecutive channels share a shift.
            shift_arr = jnp.repeat(shift_arr, in_channels // nshift)
        self.shift = shift_arr.reshape(1, -1, 1, 1)     # (1, 1|C, 1, 1) buffer

        # ---- spatial padding mode (shift folded out => plain zero pad) ----
        ph, pw = self.padding
        if ph == 0 and pw == 0:
            self.pad_mode = ""
        elif padding_mode == "zeros":
            assert nshift == 1, "Zero padding is not supported for multi-channel shift"
            self.pad_mode = "constant"   # pad(x+s, value=s) == pad(x, 0) + s
        else:
            self.pad_mode = {"reflect": "reflect",
                             "replicate": "edge",
                             "circular": "wrap"}[padding_mode]

        # ---- fold the shift into an effective bias:
        #      conv(pad(x + s)) == conv(pad(x)) + sum_{cin,kh,kw} W * s[cin] ----
        shift_per_cin = jnp.broadcast_to(shift_arr, (in_channels,))
        self.bias_eff = self.bias + jnp.einsum("oihw,i->o",
                                               self.weight, shift_per_cin)

        # ---- precompute GEMM operands + tiling policy once ----
        k_dim = in_channels * kh * kw
        if k_dim <= 2048:
            # single K grid step => whole weight stays resident in VMEM.
            self.tk = _round_up(k_dim, 128)
        else:
            # >=256 fills the 256-wide MXU contraction on v6e/v7x.
            self.tk = 512
        self.k_pad = _round_up(k_dim, self.tk)
        self.coutp = _round_up(out_channels, 128)        # lane-dense output
        self.tn = next(t for t in (512, 256, 128) if self.coutp % t == 0)

        # weight -> (KH*KW*Cin, Cout), K order (tap, cin) matching the patches.
        w_mat = jnp.transpose(self.weight, (2, 3, 1, 0)).reshape(k_dim,
                                                                 out_channels)
        w_mat = jnp.pad(w_mat, ((0, self.k_pad - k_dim),
                                (0, self.coutp - out_channels)))
        self.w_mat = w_mat.astype(jnp.bfloat16)
        self.bias_row = jnp.pad(self.bias_eff,
                                (0, self.coutp - out_channels)
                                ).reshape(1, -1).astype(jnp.float32)

    def __call__(self, x):
        # x: (N, C, H, W) float32
        n = x.shape[0]
        kh, kw = self.kernel_size
        sh, sw = self.stride
        ph, pw = self.padding
        dh, dw = self.dilation

        xs = jnp.transpose(x, (0, 2, 3, 1))              # NCHW -> NHWC (lane = C)
        if self.pad_mode == "constant":
            xp = jnp.pad(xs, ((0, 0), (ph, ph), (pw, pw), (0, 0)))  # plain zeros
        elif self.pad_mode:
            xp = jnp.pad(xs, ((0, 0), (ph, ph), (pw, pw), (0, 0)),
                         mode=self.pad_mode)
        else:
            xp = xs

        hp, wp = xp.shape[1], xp.shape[2]
        oh = (hp - dh * (kh - 1) - 1) // sh + 1
        ow = (wp - dw * (kw - 1) - 1) // sw + 1

        # TODO(synk): in-kernel im2col (per-tap accumulation with halo DMA)
        # would avoid materializing this KH*KW-amplified matrix in HBM.
        patches = _im2col_padded(xp.astype(jnp.bfloat16), kh, kw,
                                 (sh, sw), (dh, dw), oh, ow, self.k_pad)

        m = patches.shape[0]
        tm = min(512, _round_up(m, 32))                  # bf16 tile: multiple of 32
        y = _pallas_conv_gemm(patches, self.w_mat, self.bias_row,
                              tm=tm, tn=self.tn, tk=self.tk)   # (M, Coutp) f32
        y = y[:, :self.out_channels].reshape(n, oh, ow, self.out_channels)
        return jnp.transpose(y, (0, 3, 1, 2))            # NHWC -> NCHW boundary


# ----------------------------- reference checks ----------------------------- #
def _reference_f32(mod, x):
    """Original module semantics, full f32 (HIGHEST precision)."""
    ph, pw = mod.padding
    xs = x + mod.shift
    if mod.pad_mode == "constant":
        pad_val = float(np.asarray(mod.shift).reshape(-1)[0])
        xp = jnp.pad(xs, ((0, 0), (0, 0), (ph, ph), (pw, pw)),
                     constant_values=pad_val)
    elif mod.pad_mode:
        xp = jnp.pad(xs, ((0, 0), (0, 0), (ph, ph), (pw, pw)), mode=mod.pad_mode)
    else:
        xp = xs
    y = jax.lax.conv_general_dilated(
        xp, mod.weight, window_strides=mod.stride, padding="VALID",
        rhs_dilation=mod.dilation,
        dimension_numbers=("NCHW", "OIHW", "NCHW"),
        precision=jax.lax.Precision.HIGHEST)
    return y + mod.bias.reshape(1, -1, 1, 1)


def _reference_quantized(mod, x):
    """Mirrors the kernel's math (zero-pad, bf16 operands, shift-folded bias)."""
    ph, pw = mod.padding
    if mod.pad_mode == "constant":
        xp = jnp.pad(x, ((0, 0), (0, 0), (ph, ph), (pw, pw)))
    elif mod.pad_mode:
        xp = jnp.pad(x, ((0, 0), (0, 0), (ph, ph), (pw, pw)), mode=mod.pad_mode)
    else:
        xp = x
    xq = xp.astype(jnp.bfloat16).astype(jnp.float32)
    wq = mod.weight.astype(jnp.bfloat16).astype(jnp.float32)
    y = jax.lax.conv_general_dilated(
        xq, wq, window_strides=mod.stride, padding="VALID",
        rhs_dilation=mod.dilation,
        dimension_numbers=("NCHW", "OIHW", "NCHW"),
        precision=jax.lax.Precision.HIGHEST)
    return y + mod.bias_eff.reshape(1, -1, 1, 1)


if __name__ == "__main__":
    key = jax.random.PRNGKey(0)
    k_param, k_x = jax.random.split(key)

    batch, cin, cout, spatial = 2, 4, 8, 16
    mod = ShiftedConv2dPallas(cin, cout, kernel_size=3, shift=0.5,
                              stride=1, padding=1, dilation=1, key=k_param)

    x = jax.random.normal(k_x, (batch, cin, spatial, spatial), jnp.float32)

    y = jax.block_until_ready(mod(x))
    assert y.shape == (batch, cout, spatial, spatial)

    # Tight check vs a reference that quantizes identically (bf16 operands,
    # f32 accumulate, shift folded into bias).
    y_q = jax.block_until_ready(_reference_quantized(mod, x))
    np.testing.assert_allclose(np.asarray(y), np.asarray(y_q),
                               rtol=2e-3, atol=2e-3)

    # Semantic check vs the original module math in full f32 (validates the
    # shift->bias folding); tolerance at bf16 operand-quantization level.
    y_f = jax.block_until_ready(_reference_f32(mod, x))
    np.testing.assert_allclose(np.asarray(y), np.asarray(y_f),
                               rtol=5e-2, atol=5e-2)

    print("KERNEL_OK")
</pallas_src>

<mosaic_0001>
module attributes {stable_mosaic.version = 11 : i64} {
  func.func @_conv_gemm_kernel(%arg0: i32, %arg1: i32, %arg2: i32, %arg3: memref<512x128xbf16, #tpu.memory_space<vmem>>, %arg4: memref<128x128xbf16, #tpu.memory_space<vmem>>, %arg5: memref<1x128xf32, #tpu.memory_space<vmem>>, %arg6: memref<512x128xf32, #tpu.memory_space<vmem>>) attributes {dimension_semantics = [#tpu.dimension_semantics<parallel>, #tpu.dimension_semantics<parallel>, #tpu.dimension_semantics<arbitrary>], iteration_bounds = array<i64: 1, 1, 1>, scalar_prefetch = 0 : i64, scratch_operands = 0 : i64, tpu.core_type = #tpu.core_type<tc>, window_params = [{transform_indices = @transform_0, window_bounds = array<i64: 512, 128>}, {transform_indices = @transform_1, window_bounds = array<i64: 128, 128>}, {transform_indices = @transform_2, window_bounds = array<i64: 1, 128>}, {transform_indices = @transform_3, window_bounds = array<i64: 512, 128>}]} {
    %c0_i32 = arith.constant 0 : i32
    %0 = arith.cmpi eq, %arg2, %c0_i32 : i32
    %1 = arith.extui %0 : i1 to i32
    %c0_i32_0 = arith.constant 0 : i32
    %2 = arith.cmpi ne, %1, %c0_i32_0 : i32
    scf.if %2 {
      %c0_8 = arith.constant 0 : index
      %c0_9 = arith.constant 0 : index
      %9 = vector.load %arg5[%c0_8, %c0_9] : memref<1x128xf32, #tpu.memory_space<vmem>>, vector<1x128xf32>
      %10 = vector.shape_cast %9 : vector<1x128xf32> to vector<1x128xf32>
      %11 = vector.broadcast %10 : vector<1x128xf32> to vector<512x128xf32>
      %c0_10 = arith.constant 0 : index
      %c0_11 = arith.constant 0 : index
      %12 = vector.load %arg6[%c0_10, %c0_11] : memref<512x128xf32, #tpu.memory_space<vmem>>, vector<512x128xf32>
      tpu.vector_store %arg6[%c0_10, %c0_11], %11 {strides = array<i32>} : memref<512x128xf32, #tpu.memory_space<vmem>>, vector<512x128xf32>,
    } else {
    }
    %c0 = arith.constant 0 : index
    %c0_1 = arith.constant 0 : index
    %3 = vector.load %arg6[%c0, %c0_1] : memref<512x128xf32, #tpu.memory_space<vmem>>, vector<512x128xf32>
    %c0_2 = arith.constant 0 : index
    %c0_3 = arith.constant 0 : index
    %4 = vector.load %arg3[%c0_2, %c0_3] : memref<512x128xbf16, #tpu.memory_space<vmem>>, vector<512x128xbf16>
    %c0_4 = arith.constant 0 : index
    %c0_5 = arith.constant 0 : index
    %5 = vector.load %arg4[%c0_4, %c0_5] : memref<128x128xbf16, #tpu.memory_space<vmem>>, vector<128x128xbf16>
    %cst = arith.constant dense<0.000000e+00> : vector<512x128xf32>
    %6 = tpu.matmul %4, %5, %cst {dimension_numbers = #tpu.dot_dimension_numbers<[1], [0], [0], [1], [0, 0, 1, 1], [], []>} : vector<512x128xbf16>, vector<128x128xbf16>, vector<512x128xf32> -> vector<512x128xf32>
    %7 = arith.addf %3, %6 : vector<512x128xf32>
    %c0_6 = arith.constant 0 : index
    %c0_7 = arith.constant 0 : index
    %8 = vector.load %arg6[%c0_6, %c0_7] : memref<512x128xf32, #tpu.memory_space<vmem>>, vector<512x128xf32>
    tpu.vector_store %arg6[%c0_6, %c0_7], %7 {strides = array<i32>} : memref<512x128xf32, #tpu.memory_space<vmem>>, vector<512x128xf32>,
    return
  }
  func.func @transform_0(%arg0: i32, %arg1: i32, %arg2: i32) -> (i32, i32) {
    %c0_i32 = arith.constant 0 : i32
    return %arg0, %arg2 : i32, i32
  }
  func.func @transform_1(%arg0: i32, %arg1: i32, %arg2: i32) -> (i32, i32) {
    %c0_i32 = arith.constant 0 : i32
    return %arg2, %arg1 : i32, i32
  }
  func.func @transform_2(%arg0: i32, %arg1: i32, %arg2: i32) -> (i32, i32) {
    %c0_i32 = arith.constant 0 : i32
    %c0_i32_0 = arith.constant 0 : i32
    return %c0_i32, %arg1 : i32, i32
  }
  func.func @transform_3(%arg0: i32, %arg1: i32, %arg2: i32) -> (i32, i32) {
    %c0_i32 = arith.constant 0 : i32
    return %arg0, %arg1 : i32, i32
  }
}

</mosaic_0001>

<llo_original>
// kernel: tpu_custom_call.1
$region0: #{tpu_custom_call.1}
  #allocation0 [shape = 'u32[]', space=smem, size = 0x4, offset = 0x4, fixed_abs, tag = 'smem constant byte address 0x4 - core index']
  #allocation1 [shape = 'u32[144,128]{1,0:T(1,128)}', space=vmem, size = 0x12000, scoped, tag = 'internal scratch']
  %s0 = inlined_call_operand.hbm [shape: bf16[512,128], index: 0, kind: input, shape index: {}]
  %s1 = inlined_call_operand.hbm [shape: bf16[128,128], index: 1, kind: input, shape index: {}]
  %s2 = inlined_call_operand.vmem [shape: f32[1,128], index: 2, kind: input, shape index: {}]
  %s3 = inlined_call_operand.hbm [shape: f32[512,128], index: 3, kind: output, shape index: {}]
  %s4 = sld [smem:[#allocation0]]
  $region34: #{tpu_custom_call.1} parent=0
    _
  %s6 = ssub.s32 1, %s4
  %s7 = scalar_select 0, %s6, %s4
  $region1: #{tpu_custom_call.1} parent=0
    #allocation2 [shape = 'u8[131072]{0}', space=vmem, size = 0x20000, scoped, tag = 'input window, operand 0, single buffered']
    #allocation3 [shape = 's32[1]{0}', space=sflag, size = 0x4, scoped, tag = 'scoped memory for tpu_custom_call.1']
    #allocation4 [shape = 's32[1]{0}', space=sflag, size = 0x4, scoped, tag = 'scoped memory for tpu_custom_call.1']
    #allocation5 [shape = 'u8[32768]{0}', space=vmem, size = 0x8000, scoped, tag = 'input window, operand 1, single buffered']
    #allocation6 [shape = 's32[1]{0}', space=sflag, size = 0x4, scoped, tag = 'scoped memory for tpu_custom_call.1']
    #allocation7 [shape = 'u8[262144]{0}', space=vmem, size = 0x40000, scoped, tag = 'output window, operand 0, single buffered']
    %8 = vsyncpa [#allocation3], 0
    %9 = vsyncpa [#allocation6], 0
    %10 = vsyncpa [#allocation4], 0
    // Predicated region
    $region2: #{tpu_custom_call.1} parent=1 // pred_check
      _
    $region3: #{tpu_custom_call.1} parent=1 // pred_check_branch
      %12 = sbr.rel (0) target = $region5
    $region4: #{tpu_custom_call.1} parent=1 // pred_region
      %s14 = ssub.s32 4096, 4096
      %15 = vsyncadd [#allocation3], %s14
      %s16 = sshll.u32 [#allocation2], 4
      %s17 = int_to_ptr.vmem [resolvable:$true] %s16
      %22 = dma.hbm_to_vmem [thread:$0]  %s0, 4096, %s17, [#allocation3], 64, 64, 4
    $region5: #{tpu_custom_call.1} parent=1 // pred_fallthru
      _
    // Predicated region
    $region6: #{tpu_custom_call.1} parent=1 // pred_check
      _
    $region7: #{tpu_custom_call.1} parent=1 // pred_check_branch
      %24 = sbr.rel (0) target = $region9
    $region8: #{tpu_custom_call.1} parent=1 // pred_region
      %s26 = ssub.s32 1024, 1024
      %27 = vsyncadd [#allocation6], %s26
      %s28 = sshll.u32 [#allocation5], 4
      %s29 = int_to_ptr.vmem [resolvable:$true] %s28
      %34 = dma.hbm_to_vmem [thread:$0]  %s1, 1024, %s29, [#allocation6], 64, 64, 4
    $region9: #{tpu_custom_call.1} parent=1 // pred_fallthru
      _
    // Predicated region
    $region10: #{tpu_custom_call.1} parent=1 // pred_check
      _
    $region11: #{tpu_custom_call.1} parent=1 // pred_check_branch
      %36 = sbr.rel (0) target = $region13
    $region12: #{tpu_custom_call.1} parent=1 // pred_region
      _
    $region13: #{tpu_custom_call.1} parent=1 // pred_fallthru
      _
    // Predicated region
    $region14: #{tpu_custom_call.1} parent=1 // pred_check
      _
    $region15: #{tpu_custom_call.1} parent=1 // pred_check_branch
      %38 = sbr.rel (0) target = $region17
    $region16: #{tpu_custom_call.1} parent=1 // pred_region
      %39 = dma.done [#allocation3], 4096
    $region17: #{tpu_custom_call.1} parent=1 // pred_fallthru
      _
    // Predicated region
    $region18: #{tpu_custom_call.1} parent=1 // pred_check
      _
    $region19: #{tpu_custom_call.1} parent=1 // pred_check_branch
      %41 = sbr.rel (0) target = $region21
    $region20: #{tpu_custom_call.1} parent=1 // pred_region
      %42 = dma.done [#allocation6], 1024
    $region21: #{tpu_custom_call.1} parent=1 // pred_fallthru
      _
    %p44 = scmp.eq.s32.totalorder 0, 0
    // Predicated region
    $region22: #{tpu_custom_call.1} parent=1 // pred_check
      %p45 = pneg %p44
    $region23: #{tpu_custom_call.1} parent=1 // pred_check_branch
      %47 = sbr.rel (%p45) target = $region25
    $region24: #{tpu_custom_call.1} parent=1 // pred_region
      %v48 = vld [vmem:[%s2] sm:$0x1]
      %v50 = vlaneseq
      %v51 = vshrl.u32 %v50, 7
      %v52 = vsub.s32 0, %v51
      %v53 = vrot.slane %v48, %v52
      %55 = vst [vmem:[#allocation7] sm:$0xff] %v53
      %56 = vst [vmem:[#allocation7 + $0x8] sm:$0xff] %v53
      %57 = vst [vmem:[#allocation7 + $0x10] sm:$0xff] %v53
      %58 = vst [vmem:[#allocation7 + $0x18] sm:$0xff] %v53
      %59 = vst [vmem:[#allocation7 + $0x20] sm:$0xff] %v53
      %60 = vst [vmem:[#allocation7 + $0x28] sm:$0xff] %v53
      %61 = vst [vmem:[#allocation7 + $0x30] sm:$0xff] %v53
      %62 = vst [vmem:[#allocation7 + $0x38] sm:$0xff] %v53
      %63 = vst [vmem:[#allocation7 + $0x40] sm:$0xff] %v53
      %64 = vst [vmem:[#allocation7 + $0x48] sm:$0xff] %v53
      %65 = vst [vmem:[#allocation7 + $0x50] sm:$0xff] %v53
      %66 = vst [vmem:[#allocation7 + $0x58] sm:$0xff] %v53
      %67 = vst [vmem:[#allocation7 + $0x60] sm:$0xff] %v53
      %68 = vst [vmem:[#allocation7 + $0x68] sm:$0xff] %v53
      %69 = vst [vmem:[#allocation7 + $0x70] sm:$0xff] %v53
      %70 = vst [vmem:[#allocation7 + $0x78] sm:$0xff] %v53
      %71 = vst [vmem:[#allocation7 + $0x80] sm:$0xff] %v53
      %72 = vst [vmem:[#allocation7 + $0x88] sm:$0xff] %v53
      %73 = vst [vmem:[#allocation7 + $0x90] sm:$0xff] %v53
      %74 = vst [vmem:[#allocation7 + $0x98] sm:$0xff] %v53
      %75 = vst [vmem:[#allocation7 + $0xa0] sm:$0xff] %v53
      %76 = vst [vmem:[#allocation7 + $0xa8] sm:$0xff] %v53
      %77 = vst [vmem:[#allocation7 + $0xb0] sm:$0xff] %v53
      %78 = vst [vmem:[#allocation7 + $0xb8] sm:$0xff] %v53
      %79 = vst [vmem:[#allocation7 + $0xc0] sm:$0xff] %v53
      %80 = vst [vmem:[#allocation7 + $0xc8] sm:$0xff] %v53
      %81 = vst [vmem:[#allocation7 + $0xd0] sm:$0xff] %v53
      %82 = vst [vmem:[#allocation7 + $0xd8] sm:$0xff] %v53
      %83 = vst [vmem:[#allocation7 + $0xe0] sm:$0xff] %v53
      %84 = vst [vmem:[#allocation7 + $0xe8] sm:$0xff] %v53
      %85 = vst [vmem:[#allocation7 + $0xf0] sm:$0xff] %v53
      %86 = vst [vmem:[#allocation7 + $0xf8] sm:$0xff] %v53
      %87 = vst [vmem:[#allocation7 + $0x100] sm:$0xff] %v53
      %88 = vst [vmem:[#allocation7 + $0x108] sm:$0xff] %v53
      %89 = vst [vmem:[#allocation7 + $0x110] sm:$0xff] %v53
      %90 = vst [vmem:[#allocation7 + $0x118] sm:$0xff] %v53
      %91 = vst [vmem:[#allocation7 + $0x120] sm:$0xff] %v53
      %92 = vst [vmem:[#allocation7 + $0x128] sm:$0xff] %v53
      %93 = vst [vmem:[#allocation7 + $0x130] sm:$0xff] %v53
      %94 = vst [vmem:[#allocation7 + $0x138] sm:$0xff] %v53
      %95 = vst [vmem:[#allocation7 + $0x140] sm:$0xff] %v53
      %96 = vst [vmem:[#allocation7 + $0x148] sm:$0xff] %v53
      %97 = vst [vmem:[#allocation7 + $0x150] sm:$0xff] %v53
      %98 = vst [vmem:[#allocation7 + $0x158] sm:$0xff] %v53
      %99 = vst [vmem:[#allocation7 + $0x160] sm:$0xff] %v53
      %100 = vst [vmem:[#allocation7 + $0x168] sm:$0xff] %v53
      %101 = vst [vmem:[#allocation7 + $0x170] sm:$0xff] %v53
      %102 = vst [vmem:[#allocation7 + $0x178] sm:$0xff] %v53
      %103 = vst [vmem:[#allocation7 + $0x180] sm:$0xff] %v53
      %104 = vst [vmem:[#allocation7 + $0x188] sm:$0xff] %v53
      %105 = vst [vmem:[#allocation7 + $0x190] sm:$0xff] %v53
      %106 = vst [vmem:[#allocation7 + $0x198] sm:$0xff] %v53
      %107 = vst [vmem:[#allocation7 + $0x1a0] sm:$0xff] %v53
      %108 = vst [vmem:[#allocation7 + $0x1a8] sm:$0xff] %v53
      %109 = vst [vmem:[#allocation7 + $0x1b0] sm:$0xff] %v53
      %110 = vst [vmem:[#allocation7 + $0x1b8] sm:$0xff] %v53
      %111 = vst [vmem:[#allocation7 + $0x1c0] sm:$0xff] %v53
      %112 = vst [vmem:[#allocation7 + $0x1c8] sm:$0xff] %v53
      %113 = vst [vmem:[#allocation7 + $0x1d0] sm:$0xff] %v53
      %114 = vst [vmem:[#allocation7 + $0x1d8] sm:$0xff] %v53
      %115 = vst [vmem:[#allocation7 + $0x1e0] sm:$0xff] %v53
      %116 = vst [vmem:[#allocation7 + $0x1e8] sm:$0xff] %v53
      %117 = vst [vmem:[#allocation7 + $0x1f0] sm:$0xff] %v53
      %118 = vst [vmem:[#allocation7 + $0x1f8] sm:$0xff] %v53
    $region25: #{tpu_custom_call.1} parent=1 // pred_fallthru
      _
    %v119 = vld [vmem:[#allocation7] sm:$0xff]
    %v120 = vld [vmem:[#allocation7 + $0x8] sm:$0xff]
    %v121 = vld [vmem:[#allocation7 + $0x10] sm:$0xff]
    %v122 = vld [vmem:[#allocation7 + $0x18] sm:$0xff]
    %v123 = vld [vmem:[#allocation7 + $0x20] sm:$0xff]
    %v124 = vld [vmem:[#allocation7 + $0x28] sm:$0xff]
    %v125 = vld [vmem:[#allocation7 + $0x30] sm:$0xff]
    %v126 = vld [vmem:[#allocation7 + $0x38] sm:$0xff]
    %v127 = vld [vmem:[#allocation7 + $0x40] sm:$0xff]
    %v128 = vld [vmem:[#allocation7 + $0x48] sm:$0xff]
    %v129 = vld [vmem:[#allocation7 + $0x50] sm:$0xff]
    %v130 = vld [vmem:[#allocation7 + $0x58] sm:$0xff]
    %v131 = vld [vmem:[#allocation7 + $0x60] sm:$0xff]
    %v132 = vld [vmem:[#allocation7 + $0x68] sm:$0xff]
    %v133 = vld [vmem:[#allocation7 + $0x70] sm:$0xff]
    %v134 = vld [vmem:[#allocation7 + $0x78] sm:$0xff]
    %v135 = vld [vmem:[#allocation7 + $0x80] sm:$0xff]
    %v136 = vld [vmem:[#allocation7 + $0x88] sm:$0xff]
    %v137 = vld [vmem:[#allocation7 + $0x90] sm:$0xff]
    %v138 = vld [vmem:[#allocation7 + $0x98] sm:$0xff]
    %v139 = vld [vmem:[#allocation7 + $0xa0] sm:$0xff]
    %v140 = vld [vmem:[#allocation7 + $0xa8] sm:$0xff]
    %v141 = vld [vmem:[#allocation7 + $0xb0] sm:$0xff]
    %v142 = vld [vmem:[#allocation7 + $0xb8] sm:$0xff]
    %v143 = vld [vmem:[#allocation7 + $0xc0] sm:$0xff]
    %v144 = vld [vmem:[#allocation7 + $0xc8] sm:$0xff]
    %v145 = vld [vmem:[#allocation7 + $0xd0] sm:$0xff]
    %v146 = vld [vmem:[#allocation7 + $0xd8] sm:$0xff]
    %v147 = vld [vmem:[#allocation7 + $0xe0] sm:$0xff]
    %v148 = vld [vmem:[#allocation7 + $0xe8] sm:$0xff]
    %v149 = vld [vmem:[#allocation7 + $0xf0] sm:$0xff]
    %v150 = vld [vmem:[#allocation7 + $0xf8] sm:$0xff]
    %v151 = vld [vmem:[#allocation7 + $0x100] sm:$0xff]
    %v152 = vld [vmem:[#allocation7 + $0x108] sm:$0xff]
    %v153 = vld [vmem:[#allocation7 + $0x110] sm:$0xff]
    %v154 = vld [vmem:[#allocation7 + $0x118] sm:$0xff]
    %v155 = vld [vmem:[#allocation7 + $0x120] sm:$0xff]
    %v156 = vld [vmem:[#allocation7 + $0x128] sm:$0xff]
    %v157 = vld [vmem:[#allocation7 + $0x130] sm:$0xff]
    %v158 = vld [vmem:[#allocation7 + $0x138] sm:$0xff]
    %v159 = vld [vmem:[#allocation7 + $0x140] sm:$0xff]
    %v160 = vld [vmem:[#allocation7 + $0x148] sm:$0xff]
    %v161 = vld [vmem:[#allocation7 + $0x150] sm:$0xff]
    %v162 = vld [vmem:[#allocation7 + $0x158] sm:$0xff]
    %v163 = vld [vmem:[#allocation7 + $0x160] sm:$0xff]
    %v164 = vld [vmem:[#allocation7 + $0x168] sm:$0xff]
    %v165 = vld [vmem:[#allocation7 + $0x170] sm:$0xff]
    %v166 = vld [vmem:[#allocation7 + $0x178] sm:$0xff]
    %v167 = vld [vmem:[#allocation7 + $0x180] sm:$0xff]
    %v168 = vld [vmem:[#allocation7 + $0x188] sm:$0xff]
    %v169 = vld [vmem:[#allocation7 + $0x190] sm:$0xff]
    %v170 = vld [vmem:[#allocation7 + $0x198] sm:$0xff]
    %v171 = vld [vmem:[#allocation7 + $0x1a0] sm:$0xff]
    %v172 = vld [vmem:[#allocation7 + $0x1a8] sm:$0xff]
    %v173 = vld [vmem:[#allocation7 + $0x1b0] sm:$0xff]
    %v174 = vld [vmem:[#allocation7 + $0x1b8] sm:$0xff]
    %v175 = vld [vmem:[#allocation7 + $0x1c0] sm:$0xff]
    %v176 = vld [vmem:[#allocation7 + $0x1c8] sm:$0xff]
    %v177 = vld [vmem:[#allocation7 + $0x1d0] sm:$0xff]
    %v178 = vld [vmem:[#allocation7 + $0x1d8] sm:$0xff]
    %v179 = vld [vmem:[#allocation7 + $0x1e0] sm:$0xff]
    %v180 = vld [vmem:[#allocation7 + $0x1e8] sm:$0xff]
    %v181 = vld [vmem:[#allocation7 + $0x1f0] sm:$0xff]
    %v182 = vld [vmem:[#allocation7 + $0x1f8] sm:$0xff]
    %v183 = vld [vmem:[#allocation2] sm:$0xf]
    %v184 = vld [vmem:[#allocation2 + $0x4] sm:$0xf]
    %v185 = vld [vmem:[#allocation2 + $0x8] sm:$0xf]
    %v186 = vld [vmem:[#allocation2 + $0xc] sm:$0xf]
    %v187 = vld [vmem:[#allocation2 + $0x10] sm:$0xf]
    %v188 = vld [vmem:[#allocation2 + $0x14] sm:$0xf]
    %v189 = vld [vmem:[#allocation2 + $0x18] sm:$0xf]
    %v190 = vld [vmem:[#allocation2 + $0x1c] sm:$0xf]
    %v191 = vld [vmem:[#allocation2 + $0x20] sm:$0xf]
    %v192 = vld [vmem:[#allocation2 + $0x24] sm:$0xf]
    %v193 = vld [vmem:[#allocation2 + $0x28] sm:$0xf]
    %v194 = vld [vmem:[#allocation2 + $0x2c] sm:$0xf]
    %v195 = vld [vmem:[#allocation2 + $0x30] sm:$0xf]
    %v196 = vld [vmem:[#allocation2 + $0x34] sm:$0xf]
    %v197 = vld [vmem:[#allocation2 + $0x38] sm:$0xf]
    %v198 = vld [vmem:[#allocation2 + $0x3c] sm:$0xf]
    %v199 = vld [vmem:[#allocation2 + $0x40] sm:$0xf]
    %v200 = vld [vmem:[#allocation2 + $0x44] sm:$0xf]
    %v201 = vld [vmem:[#allocation2 + $0x48] sm:$0xf]
    %v202 = vld [vmem:[#allocation2 + $0x4c] sm:$0xf]
    %v203 = vld [vmem:[#allocation2 + $0x50] sm:$0xf]
    %v204 = vld [vmem:[#allocation2 + $0x54] sm:$0xf]
    %v205 = vld [vmem:[#allocation2 + $0x58] sm:$0xf]
    %v206 = vld [vmem:[#allocation2 + $0x5c] sm:$0xf]
    %v207 = vld [vmem:[#allocation2 + $0x60] sm:$0xf]
    %v208 = vld [vmem:[#allocation2 + $0x64] sm:$0xf]
    %v209 = vld [vmem:[#allocation2 + $0x68] sm:$0xf]
    %v210 = vld [vmem:[#allocation2 + $0x6c] sm:$0xf]
    %v211 = vld [vmem:[#allocation2 + $0x70] sm:$0xf]
    %v212 = vld [vmem:[#allocation2 + $0x74] sm:$0xf]
    %v213 = vld [vmem:[#allocation2 + $0x78] sm:$0xf]
    %v214 = vld [vmem:[#allocation2 + $0x7c] sm:$0xf]
    %v215 = vld [vmem:[#allocation2 + $0x80] sm:$0xf]
    %v216 = vld [vmem:[#allocation2 + $0x84] sm:$0xf]
    %v217 = vld [vmem:[#allocation2 + $0x88] sm:$0xf]
    %v218 = vld [vmem:[#allocation2 + $0x8c] sm:$0xf]
    %v219 = vld [vmem:[#allocation2 + $0x90] sm:$0xf]
    %v220 = vld [vmem:[#allocation2 + $0x94] sm:$0xf]
    %v221 = vld [vmem:[#allocation2 + $0x98] sm:$0xf]
    %v222 = vld [vmem:[#allocation2 + $0x9c] sm:$0xf]
    %v223 = vld [vmem:[#allocation2 + $0xa0] sm:$0xf]
    %v224 = vld [vmem:[#allocation2 + $0xa4] sm:$0xf]
    %v225 = vld [vmem:[#allocation2 + $0xa8] sm:$0xf]
    %v226 = vld [vmem:[#allocation2 + $0xac] sm:$0xf]
    %v227 = vld [vmem:[#allocation2 + $0xb0] sm:$0xf]
    %v228 = vld [vmem:[#allocation2 + $0xb4] sm:$0xf]
    %v229 = vld [vmem:[#allocation2 + $0xb8] sm:$0xf]
    %v230 = vld [vmem:[#allocation2 + $0xbc] sm:$0xf]
    %v231 = vld [vmem:[#allocation2 + $0xc0] sm:$0xf]
    %v232 = vld [vmem:[#allocation2 + $0xc4] sm:$0xf]
    %v233 = vld [vmem:[#allocation2 + $0xc8] sm:$0xf]
    %v234 = vld [vmem:[#allocation2 + $0xcc] sm:$0xf]
    %v235 = vld [vmem:[#allocation2 + $0xd0] sm:$0xf]
    %v236 = vld [vmem:[#allocation2 + $0xd4] sm:$0xf]
    %v237 = vld [vmem:[#allocation2 + $0xd8] sm:$0xf]
    %v238 = vld [vmem:[#allocation2 + $0xdc] sm:$0xf]
    %v239 = vld [vmem:[#allocation2 + $0xe0] sm:$0xf]
    %v240 = vld [vmem:[#allocation2 + $0xe4] sm:$0xf]
    %v241 = vld [vmem:[#allocation2 + $0xe8] sm:$0xf]
    %v242 = vld [vmem:[#allocation2 + $0xec] sm:$0xf]
    %v243 = vld [vmem:[#allocation2 + $0xf0] sm:$0xf]
    %v244 = vld [vmem:[#allocation2 + $0xf4] sm:$0xf]
    %v245 = vld [vmem:[#allocation2 + $0xf8] sm:$0xf]
    %v246 = vld [vmem:[#allocation2 + $0xfc] sm:$0xf]
    %v247 = vld [vmem:[#allocation5] sm:$0xf]
    %v248 = vld [vmem:[#allocation5 + $0x4] sm:$0xf]
    %v249 = vld [vmem:[#allocation5 + $0x8] sm:$0xf]
    %v250 = vld [vmem:[#allocation5 + $0xc] sm:$0xf]
    %v251 = vld [vmem:[#allocation5 + $0x10] sm:$0xf]
    %v252 = vld [vmem:[#allocation5 + $0x14] sm:$0xf]
    %v253 = vld [vmem:[#allocation5 + $0x18] sm:$0xf]
    %v254 = vld [vmem:[#allocation5 + $0x1c] sm:$0xf]
    %v255 = vld [vmem:[#allocation5 + $0x20] sm:$0xf]
    %v256 = vld [vmem:[#allocation5 + $0x24] sm:$0xf]
    %v257 = vld [vmem:[#allocation5 + $0x28] sm:$0xf]
    %v258 = vld [vmem:[#allocation5 + $0x2c] sm:$0xf]
    %v259 = vld [vmem:[#allocation5 + $0x30] sm:$0xf]
    %v260 = vld [vmem:[#allocation5 + $0x34] sm:$0xf]
    %v261 = vld [vmem:[#allocation5 + $0x38] sm:$0xf]
    %v262 = vld [vmem:[#allocation5 + $0x3c] sm:$0xf]
    %v327 = vunpack.c.l.b16 %v183
    %v328 = vunpack.c.l.b16 %v184
    %v329 = vunpack.c.l.b16 %v185
    %v330 = vunpack.c.l.b16 %v186
    %v331 = vunpack.c.l.b16 %v187
    %v332 = vunpack.c.l.b16 %v188
    %v333 = vunpack.c.l.b16 %v189
    %v334 = vunpack.c.l.b16 %v190
    %v335 = vunpack.c.l.b16 %v191
    %v336 = vunpack.c.l.b16 %v192
    %v337 = vunpack.c.l.b16 %v193
    %v338 = vunpack.c.l.b16 %v194
    %v339 = vunpack.c.l.b16 %v195
    %v340 = vunpack.c.l.b16 %v196
    %v341 = vunpack.c.l.b16 %v197
    %v342 = vunpack.c.l.b16 %v198
    %v343 = vunpack.c.l.b16 %v199
    %v344 = vunpack.c.l.b16 %v200
    %v345 = vunpack.c.l.b16 %v201
    %v346 = vunpack.c.l.b16 %v202
    %v347 = vunpack.c.l.b16 %v203
    %v348 = vunpack.c.l.b16 %v204
    %v349 = vunpack.c.l.b16 %v205
    %v350 = vunpack.c.l.b16 %v206
    %v351 = vunpack.c.l.b16 %v207
    %v352 = vunpack.c.l.b16 %v208
    %v353 = vunpack.c.l.b16 %v209
    %v354 = vunpack.c.l.b16 %v210
    %v355 = vunpack.c.l.b16 %v211
    %v356 = vunpack.c.l.b16 %v212
    %v357 = vunpack.c.l.b16 %v213
    %v358 = vunpack.c.l.b16 %v214
    %v359 = vunpack.c.l.b16 %v215
    %v360 = vunpack.c.l.b16 %v216
    %v361 = vunpack.c.l.b16 %v217
    %v362 = vunpack.c.l.b16 %v218
    %v363 = vunpack.c.l.b16 %v219
    %v364 = vunpack.c.l.b16 %v220
    %v365 = vunpack.c.l.b16 %v221
    %v366 = vunpack.c.l.b16 %v222
    %v367 = vunpack.c.l.b16 %v223
    %v368 = vunpack.c.l.b16 %v224
    %v369 = vunpack.c.l.b16 %v225
    %v370 = vunpack.c.l.b16 %v226
    %v371 = vunpack.c.l.b16 %v227
    %v372 = vunpack.c.l.b16 %v228
    %v373 = vunpack.c.l.b16 %v229
    %v374 = vunpack.c.l.b16 %v230
    %v375 = vunpack.c.l.b16 %v231
    %v376 = vunpack.c.l.b16 %v232
    %v377 = vunpack.c.l.b16 %v233
    %v378 = vunpack.c.l.b16 %v234
    %v379 = vunpack.c.l.b16 %v235
    %v380 = vunpack.c.l.b16 %v236
    %v381 = vunpack.c.l.b16 %v237
    %v382 = vunpack.c.l.b16 %v238
    %v383 = vunpack.c.l.b16 %v239
    %v384 = vunpack.c.l.b16 %v240
    %v385 = vunpack.c.l.b16 %v241
    %v386 = vunpack.c.l.b16 %v242
    %v387 = vunpack.c.l.b16 %v243
    %v388 = vunpack.c.l.b16 %v244
    %v389 = vunpack.c.l.b16 %v245
    %v390 = vunpack.c.l.b16 %v246
    %v391 = vpack.c.b16 %v328, %v327
    %v392 = vpack.c.b16 %v330, %v329
    %v393 = vpack.c.b16 %v332, %v331
    %v394 = vpack.c.b16 %v334, %v333
    %v395 = vpack.c.b16 %v336, %v335
    %v396 = vpack.c.b16 %v338, %v337
    %v397 = vpack.c.b16 %v340, %v339
    %v398 = vpack.c.b16 %v342, %v341
    %v399 = vpack.c.b16 %v344, %v343
    %v400 = vpack.c.b16 %v346, %v345
    %v401 = vpack.c.b16 %v348, %v347
    %v402 = vpack.c.b16 %v350, %v349
    %v403 = vpack.c.b16 %v352, %v351
    %v404 = vpack.c.b16 %v354, %v353
    %v405 = vpack.c.b16 %v356, %v355
    %v406 = vpack.c.b16 %v358, %v357
    %v407 = vpack.c.b16 %v360, %v359
    %v408 = vpack.c.b16 %v362, %v361
    %v409 = vpack.c.b16 %v364, %v363
    %v410 = vpack.c.b16 %v366, %v365
    %v411 = vpack.c.b16 %v368, %v367
    %v412 = vpack.c.b16 %v370, %v369
    %v413 = vpack.c.b16 %v372, %v371
    %v414 = vpack.c.b16 %v374, %v373
    %v415 = vpack.c.b16 %v376, %v375
    %v416 = vpack.c.b16 %v378, %v377
    %v417 = vpack.c.b16 %v380, %v379
    %v418 = vpack.c.b16 %v382, %v381
    %v419 = vpack.c.b16 %v384, %v383
    %v420 = vpack.c.b16 %v386, %v385
    %v421 = vpack.c.b16 %v388, %v387
    %v422 = vpack.c.b16 %v390, %v389
    %v471 = vunpack.c.l.b16 %v247
    %v472 = vunpack.c.l.b16 %v248
    %v473 = vunpack.c.l.b16 %v249
    %v474 = vunpack.c.l.b16 %v250
    %v475 = vunpack.c.l.b16 %v251
    %v476 = vunpack.c.l.b16 %v252
    %v477 = vunpack.c.l.b16 %v253
    %v478 = vunpack.c.l.b16 %v254
    %v479 = vunpack.c.l.b16 %v255
    %v480 = vunpack.c.l.b16 %v256
    %v481 = vunpack.c.l.b16 %v257
    %v482 = vunpack.c.l.b16 %v258
    %v483 = vunpack.c.l.b16 %v259
    %v484 = vunpack.c.l.b16 %v260
    %v485 = vunpack.c.l.b16 %v261
    %v486 = vunpack.c.l.b16 %v262
    %v487 = vpack.c.b16 %v472, %v471
    %v488 = vpack.c.b16 %v474, %v473
    %v489 = vpack.c.b16 %v476, %v475
    %v490 = vpack.c.b16 %v478, %v477
    %v491 = vpack.c.b16 %v480, %v479
    %v492 = vpack.c.b16 %v482, %v481
    %v493 = vpack.c.b16 %v484, %v483
    %v494 = vpack.c.b16 %v486, %v485
    %503 = vmatprep.subr.bf16.mxu0 0
    %504 = vmatpush1.bf16.msra.mxu0 %v494
    %505 = vmatprep.subr.bf16.mxu0 0
    %506 = vmatpush1.bf16.msra.mxu0 %v493
    %507 = vmatprep.subr.bf16.mxu0 0
    %508 = vmatpush1.bf16.msra.mxu0 %v492
    %509 = vmatprep.subr.bf16.mxu0 0
    %510 = vmatpush1.bf16.msra.mxu0 %v491
    %511 = vmatprep.subr.bf16.mxu0 0
    %512 = vmatpush1.bf16.msra.mxu0 %v490
    %513 = vmatprep.subr.bf16.mxu0 0
    %514 = vmatpush1.bf16.msra.mxu0 %v489
    %515 = vmatprep.subr.bf16.mxu0 0
    %516 = vmatpush1.bf16.msra.mxu0 %v488
    %517 = vmatprep.subr.bf16.mxu0 0
    %518 = vmatpush1.bf16.msra.mxu0 %v487
    %519 = vmatprep.subr.bf16.mxu0 0
    %520 = vmatpush2.bf16.msra.mxu0 0
    %521 = vmatprep.subr.bf16.mxu0 0
    %522 = vmatpush2.bf16.msra.mxu0 0
    %523 = vmatprep.subr.bf16.mxu0 0
    %524 = vmatpush2.bf16.msra.mxu0 0
    %525 = vmatprep.subr.bf16.mxu0 0
    %526 = vmatpush2.bf16.msra.mxu0 0
    %527 = vmatprep.subr.bf16.mxu0 0
    %528 = vmatpush2.bf16.msra.mxu0 0
    %529 = vmatprep.subr.bf16.mxu0 0
    %530 = vmatpush2.bf16.msra.mxu0 0
    %531 = vmatprep.subr.bf16.mxu0 0
    %532 = vmatpush2.bf16.msra.mxu0 0
    %533 = vmatprep.subr.bf16.mxu0 0
    %534 = vmatpush2.bf16.msra.mxu0 0
    %535 = vmatprep.mubr.bf16.mxu0 0
    %536 = vmatmul.mubr.bf16.gmra.mxu0 %v391
    %v537 = vpop.f32.mrf.mxu0
    %v538 = vadd.f32 0.0, %v537
    %v539 = vpop.f32.mrf.mxu0
    %v540 = vpop.f32.mrf.mxu0
    %v541 = vadd.f32 0.0, %v540
    %v542 = vpop.f32.mrf.mxu0
    %543 = vmatprep.mubr.bf16.mxu0 0
    %544 = vmatmul.mubr.bf16.gmra.mxu0 %v392
    %v545 = vpop.f32.mrf.mxu0
    %v546 = vadd.f32 0.0, %v545
    %v547 = vpop.f32.mrf.mxu0
    %v548 = vpop.f32.mrf.mxu0
    %v549 = vadd.f32 0.0, %v548
    %v550 = vpop.f32.mrf.mxu0
    %551 = vmatprep.mubr.bf16.mxu0 0
    %552 = vmatmul.mubr.bf16.gmra.mxu0 %v393
    %v553 = vpop.f32.mrf.mxu0
    %v554 = vadd.f32 0.0, %v553
    %v555 = vpop.f32.mrf.mxu0
    %v556 = vpop.f32.mrf.mxu0
    %v557 = vadd.f32 0.0, %v556
    %v558 = vpop.f32.mrf.mxu0
    %559 = vmatprep.mubr.bf16.mxu0 0
    %560 = vmatmul.mubr.bf16.gmra.mxu0 %v394
    %v561 = vpop.f32.mrf.mxu0
    %v562 = vadd.f32 0.0, %v561
    %v563 = vpop.f32.mrf.mxu0
    %v564 = vpop.f32.mrf.mxu0
    %v565 = vadd.f32 0.0, %v564
    %v566 = vpop.f32.mrf.mxu0
    %567 = vmatprep.mubr.bf16.mxu0 0
    %568 = vmatmul.mubr.bf16.gmra.mxu0 %v395
    %v569 = vpop.f32.mrf.mxu0
    %v570 = vadd.f32 0.0, %v569
    %v571 = vpop.f32.mrf.mxu0
    %v572 = vpop.f32.mrf.mxu0
    %v573 = vadd.f32 0.0, %v572
    %v574 = vpop.f32.mrf.mxu0
    %575 = vmatprep.mubr.bf16.mxu0 0
    %576 = vmatmul.mubr.bf16.gmra.mxu0 %v396
    %v577 = vpop.f32.mrf.mxu0
    %v578 = vadd.f32 0.0, %v577
    %v579 = vpop.f32.mrf.mxu0
    %v580 = vpop.f32.mrf.mxu0
    %v581 = vadd.f32 0.0, %v580
    %v582 = vpop.f32.mrf.mxu0
    %583 = vmatprep.mubr.bf16.mxu0 0
    %584 = vmatmul.mubr.bf16.gmra.mxu0 %v397
    %v585 = vpop.f32.mrf.mxu0
    %v586 = vadd.f32 0.0, %v585
    %v587 = vpop.f32.mrf.mxu0
    %v588 = vpop.f32.mrf.mxu0
    %v589 = vadd.f32 0.0, %v588
    %v590 = vpop.f32.mrf.mxu0
    %591 = vmatprep.mubr.bf16.mxu0 0
    %592 = vmatmul.mubr.bf16.gmra.mxu0 %v398
    %v593 = vpop.f32.mrf.mxu0
    %v594 = vadd.f32 0.0, %v593
    %v595 = vpop.f32.mrf.mxu0
    %v596 = vpop.f32.mrf.mxu0
    %v597 = vadd.f32 0.0, %v596
    %v598 = vpop.f32.mrf.mxu0
    %599 = vmatprep.mubr.bf16.mxu0 0
    %600 = vmatmul.mubr.bf16.gmra.mxu0 %v399
    %v601 = vpop.f32.mrf.mxu0
    %v602 = vadd.f32 0.0, %v601
    %v603 = vpop.f32.mrf.mxu0
    %v604 = vpop.f32.mrf.mxu0
    %v605 = vadd.f32 0.0, %v604
    %v606 = vpop.f32.mrf.mxu0
    %607 = vmatprep.mubr.bf16.mxu0 0
    %608 = vmatmul.mubr.bf16.gmra.mxu0 %v400
    %v609 = vpop.f32.mrf.mxu0
    %v610 = vadd.f32 0.0, %v609
    %v611 = vpop.f32.mrf.mxu0
    %v612 = vpop.f32.mrf.mxu0
    %v613 = vadd.f32 0.0, %v612
    %v614 = vpop.f32.mrf.mxu0
    %615 = vmatprep.mubr.bf16.mxu0 0
    %616 = vmatmul.mubr.bf16.gmra.mxu0 %v401
    %v617 = vpop.f32.mrf.mxu0
    %v618 = vadd.f32 0.0, %v617
    %v619 = vpop.f32.mrf.mxu0
    %v620 = vpop.f32.mrf.mxu0
    %v621 = vadd.f32 0.0, %v620
    %v622 = vpop.f32.mrf.mxu0
    %623 = vmatprep.mubr.bf16.mxu0 0
    %624 = vmatmul.mubr.bf16.gmra.mxu0 %v402
    %v625 = vpop.f32.mrf.mxu0
    %v626 = vadd.f32 0.0, %v625
    %v627 = vpop.f32.mrf.mxu0
    %v628 = vpop.f32.mrf.mxu0
    %v629 = vadd.f32 0.0, %v628
    %v630 = vpop.f32.mrf.mxu0
    %631 = vmatprep.mubr.bf16.mxu0 0
    %632 = vmatmul.mubr.bf16.gmra.mxu0 %v403
    %v633 = vpop.f32.mrf.mxu0
    %v634 = vadd.f32 0.0, %v633
    %v635 = vpop.f32.mrf.mxu0
    %v636 = vpop.f32.mrf.mxu0
    %v637 = vadd.f32 0.0, %v636
    %v638 = vpop.f32.mrf.mxu0
    %639 = vmatprep.mubr.bf16.mxu0 0
    %640 = vmatmul.mubr.bf16.gmra.mxu0 %v404
    %v641 = vpop.f32.mrf.mxu0
    %v642 = vadd.f32 0.0, %v641
    %v643 = vpop.f32.mrf.mxu0
    %v644 = vpop.f32.mrf.mxu0
    %v645 = vadd.f32 0.0, %v644
    %v646 = vpop.f32.mrf.mxu0
    %647 = vmatprep.mubr.bf16.mxu0 0
    %648 = vmatmul.mubr.bf16.gmra.mxu0 %v405
    %v649 = vpop.f32.mrf.mxu0
    %v650 = vadd.f32 0.0, %v649
    %v651 = vpop.f32.mrf.mxu0
    %v652 = vpop.f32.mrf.mxu0
    %v653 = vadd.f32 0.0, %v652
    %v654 = vpop.f32.mrf.mxu0
    %655 = vmatprep.mubr.bf16.mxu0 0
    %656 = vmatmul.mubr.bf16.gmra.mxu0 %v406
    %v657 = vpop.f32.mrf.mxu0
    %v658 = vadd.f32 0.0, %v657
    %v659 = vpop.f32.mrf.mxu0
    %v660 = vpop.f32.mrf.mxu0
    %v661 = vadd.f32 0.0, %v660
    %v662 = vpop.f32.mrf.mxu0
    %663 = vmatprep.mubr.bf16.mxu0 0
    %664 = vmatmul.mubr.bf16.gmra.mxu0 %v407
    %v665 = vpop.f32.mrf.mxu0
    %v666 = vadd.f32 0.0, %v665
    %v667 = vpop.f32.mrf.mxu0
    %v668 = vpop.f32.mrf.mxu0
    %v669 = vadd.f32 0.0, %v668
    %v670 = vpop.f32.mrf.mxu0
    %671 = vmatprep.mubr.bf16.mxu0 0
    %672 = vmatmul.mubr.bf16.gmra.mxu0 %v408
    %v673 = vpop.f32.mrf.mxu0
    %v674 = vadd.f32 0.0, %v673
    %v675 = vpop.f32.mrf.mxu0
    %v676 = vpop.f32.mrf.mxu0
    %v677 = vadd.f32 0.0, %v676
    %v678 = vpop.f32.mrf.mxu0
    %679 = vmatprep.mubr.bf16.mxu0 0
    %680 = vmatmul.mubr.bf16.gmra.mxu0 %v409
    %v681 = vpop.f32.mrf.mxu0
    %v682 = vadd.f32 0.0, %v681
    %v683 = vpop.f32.mrf.mxu0
    %v684 = vpop.f32.mrf.mxu0
    %v685 = vadd.f32 0.0, %v684
    %v686 = vpop.f32.mrf.mxu0
    %687 = vmatprep.mubr.bf16.mxu0 0
    %688 = vmatmul.mubr.bf16.gmra.mxu0 %v410
    %v689 = vpop.f32.mrf.mxu0
    %v690 = vadd.f32 0.0, %v689
    %v691 = vpop.f32.mrf.mxu0
    %v692 = vpop.f32.mrf.mxu0
    %v693 = vadd.f32 0.0, %v692
    %v694 = vpop.f32.mrf.mxu0
    %695 = vmatprep.mubr.bf16.mxu0 0
    %696 = vmatmul.mubr.bf16.gmra.mxu0 %v411
    %v697 = vpop.f32.mrf.mxu0
    %v698 = vadd.f32 0.0, %v697
    %v699 = vpop.f32.mrf.mxu0
    %v700 = vpop.f32.mrf.mxu0
    %v701 = vadd.f32 0.0, %v700
    %v702 = vpop.f32.mrf.mxu0
    %703 = vmatprep.mubr.bf16.mxu0 0
    %704 = vmatmul.mubr.bf16.gmra.mxu0 %v412
    %v705 = vpop.f32.mrf.mxu0
    %v706 = vadd.f32 0.0, %v705
    %v707 = vpop.f32.mrf.mxu0
    %v708 = vpop.f32.mrf.mxu0
    %v709 = vadd.f32 0.0, %v708
    %v710 = vpop.f32.mrf.mxu0
    %711 = vmatprep.mubr.bf16.mxu0 0
    %712 = vmatmul.mubr.bf16.gmra.mxu0 %v413
    %v713 = vpop.f32.mrf.mxu0
    %v714 = vadd.f32 0.0, %v713
    %v715 = vpop.f32.mrf.mxu0
    %v716 = vpop.f32.mrf.mxu0
    %v717 = vadd.f32 0.0, %v716
    %v718 = vpop.f32.mrf.mxu0
    %719 = vmatprep.mubr.bf16.mxu0 0
    %720 = vmatmul.mubr.bf16.gmra.mxu0 %v414
    %v721 = vpop.f32.mrf.mxu0
    %v722 = vadd.f32 0.0, %v721
    %v723 = vpop.f32.mrf.mxu0
    %v724 = vpop.f32.mrf.mxu0
    %v725 = vadd.f32 0.0, %v724
    %v726 = vpop.f32.mrf.mxu0
    %727 = vmatprep.mubr.bf16.mxu0 0
    %728 = vmatmul.mubr.bf16.gmra.mxu0 %v415
    %v729 = vpop.f32.mrf.mxu0
    %v730 = vadd.f32 0.0, %v729
    %v731 = vpop.f32.mrf.mxu0
    %v732 = vpop.f32.mrf.mxu0
    %v733 = vadd.f32 0.0, %v732
    %v734 = vpop.f32.mrf.mxu0
    %735 = vmatprep.mubr.bf16.mxu0 0
    %736 = vmatmul.mubr.bf16.gmra.mxu0 %v416
    %v737 = vpop.f32.mrf.mxu0
    %v738 = vadd.f32 0.0, %v737
    %v739 = vpop.f32.mrf.mxu0
    %v740 = vpop.f32.mrf.mxu0
    %v741 = vadd.f32 0.0, %v740
    %v742 = vpop.f32.mrf.mxu0
    %743 = vmatprep.mubr.bf16.mxu0 0
    %744 = vmatmul.mubr.bf16.gmra.mxu0 %v417
    %v745 = vpop.f32.mrf.mxu0
    %v746 = vadd.f32 0.0, %v745
    %v747 = vpop.f32.mrf.mxu0
    %v748 = vpop.f32.mrf.mxu0
    %v749 = vadd.f32 0.0, %v748
    %v750 = vpop.f32.mrf.mxu0
    %751 = vmatprep.mubr.bf16.mxu0 0
    %752 = vmatmul.mubr.bf16.gmra.mxu0 %v418
    %v753 = vpop.f32.mrf.mxu0
    %v754 = vadd.f32 0.0, %v753
    %v755 = vpop.f32.mrf.mxu0
    %v756 = vpop.f32.mrf.mxu0
    %v757 = vadd.f32 0.0, %v756
    %v758 = vpop.f32.mrf.mxu0
    %759 = vmatprep.mubr.bf16.mxu0 0
    %760 = vmatmul.mubr.bf16.gmra.mxu0 %v419
    %v761 = vpop.f32.mrf.mxu0
    %v762 = vadd.f32 0.0, %v761
    %v763 = vpop.f32.mrf.mxu0
    %v764 = vpop.f32.mrf.mxu0
    %v765 = vadd.f32 0.0, %v764
    %v766 = vpop.f32.mrf.mxu0
    %767 = vmatprep.mubr.bf16.mxu0 0
    %768 = vmatmul.mubr.bf16.gmra.mxu0 %v420
    %v769 = vpop.f32.mrf.mxu0
    %v770 = vadd.f32 0.0, %v769
    %v771 = vpop.f32.mrf.mxu0
    %v772 = vpop.f32.mrf.mxu0
    %v773 = vadd.f32 0.0, %v772
    %v774 = vpop.f32.mrf.mxu0
    %775 = vmatprep.mubr.bf16.mxu0 0
    %776 = vmatmul.mubr.bf16.gmra.mxu0 %v421
    %v777 = vpop.f32.mrf.mxu0
    %v778 = vadd.f32 0.0, %v777
    %v779 = vpop.f32.mrf.mxu0
    %v780 = vpop.f32.mrf.mxu0
    %v781 = vadd.f32 0.0, %v780
    %v782 = vpop.f32.mrf.mxu0
    %783 = vmatprep.mubr.bf16.mxu0 0
    %784 = vmatmul.mubr.bf16.gmra.mxu0 %v422
    %v785 = vpop.f32.mrf.mxu0
    %v786 = vadd.f32 0.0, %v785
    %v787 = vpop.f32.mrf.mxu0
    %v788 = vpop.f32.mrf.mxu0
    %v789 = vadd.f32 0.0, %v788
    %v790 = vpop.f32.mrf.mxu0
    %791 = vdwg.mxu0
    %v792 = vadd.f32 %v119, %v538
    %v793 = vadd.f32 %v120, %v541
    %v794 = vadd.f32 %v121, %v546
    %v795 = vadd.f32 %v122, %v549
    %v796 = vadd.f32 %v123, %v554
    %v797 = vadd.f32 %v124, %v557
    %v798 = vadd.f32 %v125, %v562
    %v799 = vadd.f32 %v126, %v565
    %v800 = vadd.f32 %v127, %v570
    %v801 = vadd.f32 %v128, %v573
    %v802 = vadd.f32 %v129, %v578
    %v803 = vadd.f32 %v130, %v581
    %v804 = vadd.f32 %v131, %v586
    %v805 = vadd.f32 %v132, %v589
    %v806 = vadd.f32 %v133, %v594
    %v807 = vadd.f32 %v134, %v597
    %v808 = vadd.f32 %v135, %v602
    %v809 = vadd.f32 %v136, %v605
    %v810 = vadd.f32 %v137, %v610
    %v811 = vadd.f32 %v138, %v613
    %v812 = vadd.f32 %v139, %v618
    %v813 = vadd.f32 %v140, %v621
    %v814 = vadd.f32 %v141, %v626
    %v815 = vadd.f32 %v142, %v629
    %v816 = vadd.f32 %v143, %v634
    %v817 = vadd.f32 %v144, %v637
    %v818 = vadd.f32 %v145, %v642
    %v819 = vadd.f32 %v146, %v645
    %v820 = vadd.f32 %v147, %v650
    %v821 = vadd.f32 %v148, %v653
    %v822 = vadd.f32 %v149, %v658
    %v823 = vadd.f32 %v150, %v661
    %v824 = vadd.f32 %v151, %v666
    %v825 = vadd.f32 %v152, %v669
    %v826 = vadd.f32 %v153, %v674
    %v827 = vadd.f32 %v154, %v677
    %v828 = vadd.f32 %v155, %v682
    %v829 = vadd.f32 %v156, %v685
    %v830 = vadd.f32 %v157, %v690
    %v831 = vadd.f32 %v158, %v693
    %v832 = vadd.f32 %v159, %v698
    %v833 = vadd.f32 %v160, %v701
    %v834 = vadd.f32 %v161, %v706
    %v835 = vadd.f32 %v162, %v709
    %v836 = vadd.f32 %v163, %v714
    %v837 = vadd.f32 %v164, %v717
    %v838 = vadd.f32 %v165, %v722
    %v839 = vadd.f32 %v166, %v725
    %v840 = vadd.f32 %v167, %v730
    %v841 = vadd.f32 %v168, %v733
    %v842 = vadd.f32 %v169, %v738
    %v843 = vadd.f32 %v170, %v741
    %v844 = vadd.f32 %v171, %v746
    %v845 = vadd.f32 %v172, %v749
    %v846 = vadd.f32 %v173, %v754
    %v847 = vadd.f32 %v174, %v757
    %v848 = vadd.f32 %v175, %v762
    %v849 = vadd.f32 %v176, %v765
    %v850 = vadd.f32 %v177, %v770
    %v851 = vadd.f32 %v178, %v773
    %v852 = vadd.f32 %v179, %v778
    %v853 = vadd.f32 %v180, %v781
    %v854 = vadd.f32 %v181, %v786
    %v855 = vadd.f32 %v182, %v789
    %856 = vst [vmem:[#allocation7] sm:$0xff] %v792
    %857 = vst [vmem:[#allocation7 + $0x8] sm:$0xff] %v793
    %858 = vst [vmem:[#allocation7 + $0x10] sm:$0xff] %v794
    %859 = vst [vmem:[#allocation7 + $0x18] sm:$0xff] %v795
    %860 = vst [vmem:[#allocation7 + $0x20] sm:$0xff] %v796
    %861 = vst [vmem:[#allocation7 + $0x28] sm:$0xff] %v797
    %862 = vst [vmem:[#allocation7 + $0x30] sm:$0xff] %v798
    %863 = vst [vmem:[#allocation7 + $0x38] sm:$0xff] %v799
    %864 = vst [vmem:[#allocation7 + $0x40] sm:$0xff] %v800
    %865 = vst [vmem:[#allocation7 + $0x48] sm:$0xff] %v801
    %866 = vst [vmem:[#allocation7 + $0x50] sm:$0xff] %v802
    %867 = vst [vmem:[#allocation7 + $0x58] sm:$0xff] %v803
    %868 = vst [vmem:[#allocation7 + $0x60] sm:$0xff] %v804
    %869 = vst [vmem:[#allocation7 + $0x68] sm:$0xff] %v805
    %870 = vst [vmem:[#allocation7 + $0x70] sm:$0xff] %v806
    %871 = vst [vmem:[#allocation7 + $0x78] sm:$0xff] %v807
    %872 = vst [vmem:[#allocation7 + $0x80] sm:$0xff] %v808
    %873 = vst [vmem:[#allocation7 + $0x88] sm:$0xff] %v809
    %874 = vst [vmem:[#allocation7 + $0x90] sm:$0xff] %v810
    %875 = vst [vmem:[#allocation7 + $0x98] sm:$0xff] %v811
    %876 = vst [vmem:[#allocation7 + $0xa0] sm:$0xff] %v812
    %877 = vst [vmem:[#allocation7 + $0xa8] sm:$0xff] %v813
    %878 = vst [vmem:[#allocation7 + $0xb0] sm:$0xff] %v814
    %879 = vst [vmem:[#allocation7 + $0xb8] sm:$0xff] %v815
    %880 = vst [vmem:[#allocation7 + $0xc0] sm:$0xff] %v816
    %881 = vst [vmem:[#allocation7 + $0xc8] sm:$0xff] %v817
    %882 = vst [vmem:[#allocation7 + $0xd0] sm:$0xff] %v818
    %883 = vst [vmem:[#allocation7 + $0xd8] sm:$0xff] %v819
    %884 = vst [vmem:[#allocation7 + $0xe0] sm:$0xff] %v820
    %885 = vst [vmem:[#allocation7 + $0xe8] sm:$0xff] %v821
    %886 = vst [vmem:[#allocation7 + $0xf0] sm:$0xff] %v822
    %887 = vst [vmem:[#allocation7 + $0xf8] sm:$0xff] %v823
    %888 = vst [vmem:[#allocation7 + $0x100] sm:$0xff] %v824
    %889 = vst [vmem:[#allocation7 + $0x108] sm:$0xff] %v825
    %890 = vst [vmem:[#allocation7 + $0x110] sm:$0xff] %v826
    %891 = vst [vmem:[#allocation7 + $0x118] sm:$0xff] %v827
    %892 = vst [vmem:[#allocation7 + $0x120] sm:$0xff] %v828
    %893 = vst [vmem:[#allocation7 + $0x128] sm:$0xff] %v829
    %894 = vst [vmem:[#allocation7 + $0x130] sm:$0xff] %v830
    %895 = vst [vmem:[#allocation7 + $0x138] sm:$0xff] %v831
    %896 = vst [vmem:[#allocation7 + $0x140] sm:$0xff] %v832
    %897 = vst [vmem:[#allocation7 + $0x148] sm:$0xff] %v833
    %898 = vst [vmem:[#allocation7 + $0x150] sm:$0xff] %v834
    %899 = vst [vmem:[#allocation7 + $0x158] sm:$0xff] %v835
    %900 = vst [vmem:[#allocation7 + $0x160] sm:$0xff] %v836
    %901 = vst [vmem:[#allocation7 + $0x168] sm:$0xff] %v837
    %902 = vst [vmem:[#allocation7 + $0x170] sm:$0xff] %v838
    %903 = vst [vmem:[#allocation7 + $0x178] sm:$0xff] %v839
    %904 = vst [vmem:[#allocation7 + $0x180] sm:$0xff] %v840
    %905 = vst [vmem:[#allocation7 + $0x188] sm:$0xff] %v841
    %906 = vst [vmem:[#allocation7 + $0x190] sm:$0xff] %v842
    %907 = vst [vmem:[#allocation7 + $0x198] sm:$0xff] %v843
    %908 = vst [vmem:[#allocation7 + $0x1a0] sm:$0xff] %v844
    %909 = vst [vmem:[#allocation7 + $0x1a8] sm:$0xff] %v845
    %910 = vst [vmem:[#allocation7 + $0x1b0] sm:$0xff] %v846
    %911 = vst [vmem:[#allocation7 + $0x1b8] sm:$0xff] %v847
    %912 = vst [vmem:[#allocation7 + $0x1c0] sm:$0xff] %v848
    %913 = vst [vmem:[#allocation7 + $0x1c8] sm:$0xff] %v849
    %914 = vst [vmem:[#allocation7 + $0x1d0] sm:$0xff] %v850
    %915 = vst [vmem:[#allocation7 + $0x1d8] sm:$0xff] %v851
    %916 = vst [vmem:[#allocation7 + $0x1e0] sm:$0xff] %v852
    %917 = vst [vmem:[#allocation7 + $0x1e8] sm:$0xff] %v853
    %918 = vst [vmem:[#allocation7 + $0x1f0] sm:$0xff] %v854
    %919 = vst [vmem:[#allocation7 + $0x1f8] sm:$0xff] %v855
    // Predicated region
    $region26: #{tpu_custom_call.1} parent=1 // pred_check
      _
    $region27: #{tpu_custom_call.1} parent=1 // pred_check_branch
      %921 = sbr.rel (0) target = $region29
    $region28: #{tpu_custom_call.1} parent=1 // pred_region
      %s923 = ssub.s32 8192, 8192
      %924 = vsyncadd [#allocation4], %s923
      %s925 = sshll.u32 [#allocation7], 4
      %s926 = int_to_ptr.vmem [resolvable:$true] %s925
      %931 = dma.vmem_to_hbm [thread:$0]  %s926, 8192, %s3, [#allocation4], 128, 128, 8
    $region29: #{tpu_custom_call.1} parent=1 // pred_fallthru
      _
    // Predicated region
    $region30: #{tpu_custom_call.1} parent=1 // pred_check
      _
    $region31: #{tpu_custom_call.1} parent=1 // pred_check_branch
      %933 = sbr.rel (0) target = $region33
    $region32: #{tpu_custom_call.1} parent=1 // pred_region
      %934 = dma.done [#allocation4], 8192
    $region33: #{tpu_custom_call.1} parent=1 // pred_fallthru
      _
    %935 = vsyncpa [#allocation3], 1
    %936 = vsyncpa [#allocation6], 1
    %937 = vsyncpa [#allocation4], 1

</llo_original>
